<compile_context>
chip_gen: v7x
topology: tpu7x:2x2x1
jax: 0.10.0
libtpu: 0.0.40
codegen_flags: <defaults>
</compile_context>

<pallas_src>
import math
import functools

import jax
import jax.numpy as jnp
from jax.experimental import pallas as pl
from jax.experimental.pallas import tpu as pltpu

LN_EPS = 1e-12  # HuggingFace ViT layer_norm_eps default


# ----------------------------------------------------------------------------- helpers
def _layernorm(x, g, b, eps=LN_EPS):
    mu = jnp.mean(x, axis=-1, keepdims=True)
    var = jnp.mean((x - mu) ** 2, axis=-1, keepdims=True)
    return (x - mu) * jax.lax.rsqrt(var + eps) * g + b


# ----------------------------------------------------------------------------- kernel 1: patch embedding GEMM
def patch_embed_kernel(x_ref, w_ref, b_ref, o_ref):
    o_ref[...] = (
        jnp.dot(x_ref[...], w_ref[...], preferred_element_type=jnp.float32)
        + b_ref[...]
    )


def patch_embed(patches, w, b):
    # patches: (B*N, C*P*P)   w: (C*P*P, H)   b: (1, H)
    M, K = patches.shape
    H = w.shape[1]
    return pl.pallas_call(
        patch_embed_kernel,
        out_shape=jax.ShapeDtypeStruct((M, H), jnp.float32),
        grid_spec=pltpu.PrefetchScalarGridSpec(
            num_scalar_prefetch=0,
            grid=(1,),
            in_specs=[
                pl.BlockSpec((M, K), lambda i: (0, 0)),
                pl.BlockSpec((K, H), lambda i: (0, 0)),
                pl.BlockSpec((1, H), lambda i: (0, 0)),
            ],
            out_specs=pl.BlockSpec((M, H), lambda i: (0, 0)),
        ),
    )(patches, w, b)


# ----------------------------------------------------------------------------- kernel 2: fused encoder stack + head
def fused_encoder_kernel(num_heads, s_real,
                         x_ref,
                         ln1g, ln1b, wqkv, bqkv, wo, bo,
                         ln2g, ln2b, w1, b1, w2, b2,
                         lnfg, lnfb, wout, bout,
                         o_ref, xbuf):
    l = pl.program_id(1)
    n_layers = pl.num_programs(1)

    # Load the embedded tokens into the resident VMEM activation buffer once per batch.
    @pl.when(l == 0)
    def _():
        xbuf[...] = x_ref[...]

    x = xbuf[...]                                  # (S_pad, H)
    S, H = x.shape
    hd = H // num_heads
    scale = 1.0 / math.sqrt(hd)

    # ---- multi-head self-attention (pre-LayerNorm, fused QKV projection) ----
    h = _layernorm(x, ln1g[...], ln1b[...])
    qkv = jnp.dot(h, wqkv[...], preferred_element_type=jnp.float32) + bqkv[...]
    q, k, v = qkv[:, :H], qkv[:, H:2 * H], qkv[:, 2 * H:]

    # heads batched on a leading (non-tiled) axis: (nh, S, hd)
    qh = jnp.stack([q[:, i * hd:(i + 1) * hd] for i in range(num_heads)], axis=0)
    kh = jnp.stack([k[:, i * hd:(i + 1) * hd] for i in range(num_heads)], axis=0)
    vh = jnp.stack([v[:, i * hd:(i + 1) * hd] for i in range(num_heads)], axis=0)

    att = jnp.einsum("hqd,hkd->hqk", qh, kh,
                     preferred_element_type=jnp.float32) * scale
    # mask padded key positions (sequence was padded up to a sublane multiple)
    key_idx = jax.lax.broadcasted_iota(jnp.int32, (1, 1, S), 2)
    att = jnp.where(key_idx < s_real, att, -1e30)
    att = att - jnp.max(att, axis=-1, keepdims=True)
    e = jnp.exp(att)
    p = e * pl.reciprocal(jnp.sum(e, axis=-1, keepdims=True), approx=True)
    ctx = jnp.einsum("hqk,hkd->hqd", p, vh, preferred_element_type=jnp.float32)
    ctx = jnp.concatenate([ctx[i] for i in range(num_heads)], axis=-1)   # (S, H)

    x = x + jnp.dot(ctx, wo[...], preferred_element_type=jnp.float32) + bo[...]

    # ---- MLP (pre-LayerNorm) ----
    h2 = _layernorm(x, ln2g[...], ln2b[...])
    m = jnp.dot(h2, w1[...], preferred_element_type=jnp.float32) + b1[...]
    m = jax.nn.gelu(m)                             # tanh-approx GELU
    x = x + jnp.dot(m, w2[...], preferred_element_type=jnp.float32) + b2[...]

    xbuf[...] = x                                  # activation stays resident in VMEM

    # ---- final LayerNorm + projection head, only after the last layer ----
    @pl.when(l == n_layers - 1)
    def _():
        hf = _layernorm(x, lnfg[...], lnfb[...])
        o_ref[...] = (
            jnp.dot(hf, wout[...], preferred_element_type=jnp.float32) + bout[...]
        )


def fused_encoder(x_padded, params, cfg, s_real):
    B, S, H = x_padded.shape
    L, M, D, nh = cfg["layers"], cfg["mlp"], cfg["out_dim"], cfg["heads"]
    hd = H // nh

    def layer_spec(r, c):       # stacked per-layer weights, streamed per grid step
        return pl.BlockSpec((None, r, c), lambda b, l: (l, 0, 0))

    def const_spec(r, c):       # head params, same block for every grid step
        return pl.BlockSpec((r, c), lambda b, l: (0, 0))

    args = (x_padded,
            params["ln1_g"], params["ln1_b"], params["wqkv"], params["bqkv"],
            params["wo"], params["bo"], params["ln2_g"], params["ln2_b"],
            params["w1"], params["b1"], params["w2"], params["b2"],
            params["ln_f_g"], params["ln_f_b"], params["w_out"], params["b_out"])

    flops_layer = (2 * S * H * 3 * H + 4 * nh * S * S * hd
                   + 2 * S * H * H + 4 * S * H * M)
    cost = pl.CostEstimate(
        flops=B * (L * flops_layer + 2 * S * H * D),
        transcendentals=B * L * (nh * S * S + S * M),
        bytes_accessed=4 * (sum(int(a.size) for a in args) + B * S * D),
    )

    in_specs = [
        pl.BlockSpec((None, S, H), lambda b, l: (b, 0, 0)),   # embedded tokens
        layer_spec(1, H), layer_spec(1, H),                   # ln1
        layer_spec(H, 3 * H), layer_spec(1, 3 * H),           # fused QKV
        layer_spec(H, H), layer_spec(1, H),                   # attn out-proj
        layer_spec(1, H), layer_spec(1, H),                   # ln2
        layer_spec(H, M), layer_spec(1, M),                   # mlp fc1
        layer_spec(M, H), layer_spec(1, H),                   # mlp fc2
        const_spec(1, H), const_spec(1, H),                   # final LN
        const_spec(H, D), const_spec(1, D),                   # projection head
    ]

    return pl.pallas_call(
        functools.partial(fused_encoder_kernel, nh, s_real),
        out_shape=jax.ShapeDtypeStruct((B, S, D), jnp.float32),
        grid_spec=pltpu.PrefetchScalarGridSpec(
            num_scalar_prefetch=0,
            grid=(B, L),                 # layer axis innermost; activation stays in VMEM
            in_specs=in_specs,
            out_specs=pl.BlockSpec((None, S, D), lambda b, l: (b, 0, 0)),
            scratch_shapes=[pltpu.VMEM((S, H), jnp.float32)],
        ),
        compiler_params=pltpu.CompilerParams(
            dimension_semantics=("parallel", "arbitrary")),
        cost_estimate=cost,
    )(*args)


# ----------------------------------------------------------------------------- glue
def extract_patches(pixel_values, P):
    # NCHW -> (B, num_patches, C*P*P) with (c, ph, pw) ordering (matches Conv2d flatten)
    B, C, Hi, Wi = pixel_values.shape
    nh, nw = Hi // P, Wi // P
    x = pixel_values.reshape(B, C, nh, P, nw, P)
    x = x.transpose(0, 2, 4, 1, 3, 5)
    return x.reshape(B, nh * nw, C * P * P)


def vit_extractor_forward(pixel_values, params, cfg):
    B = pixel_values.shape[0]
    H = cfg["hidden"]
    patches = extract_patches(pixel_values, cfg["patch"])      # (B, N, K)
    _, N, K = patches.shape
    emb = patch_embed(patches.reshape(B * N, K), params["patch_w"], params["patch_b"])
    emb = emb.reshape(B, N, H)
    cls = jnp.broadcast_to(params["cls"], (B, 1, H))
    x = jnp.concatenate([cls, emb], axis=1) + params["pos"]    # (B, S_real, H)
    s_real = N + 1
    s_pad = 8 * ((s_real + 7) // 8)                            # sublane-align the sequence
    if s_pad != s_real:
        x = jnp.pad(x, ((0, 0), (0, s_pad - s_real), (0, 0)))
    feats = fused_encoder(x, params, cfg, s_real)              # (B, s_pad, out_dim)
    return feats[:, :s_real, :]


# plain-JAX reference for correctness checking (same math, unpadded, no Pallas)
def vit_extractor_reference(pixel_values, params, cfg):
    B = pixel_values.shape[0]
    H, nh = cfg["hidden"], cfg["heads"]
    hd = H // nh
    patches = extract_patches(pixel_values, cfg["patch"])
    emb = patches @ params["patch_w"] + params["patch_b"]
    cls = jnp.broadcast_to(params["cls"], (B, 1, H))
    x = jnp.concatenate([cls, emb], axis=1) + params["pos"]
    S = x.shape[1]
    for l in range(cfg["layers"]):
        h = _layernorm(x, params["ln1_g"][l], params["ln1_b"][l])
        qkv = h @ params["wqkv"][l] + params["bqkv"][l]
        q, k, v = qkv[..., :H], qkv[..., H:2 * H], qkv[..., 2 * H:]
        qh = q.reshape(B, S, nh, hd).transpose(0, 2, 1, 3)
        kh = k.reshape(B, S, nh, hd).transpose(0, 2, 1, 3)
        vh = v.reshape(B, S, nh, hd).transpose(0, 2, 1, 3)
        att = jnp.einsum("bhqd,bhkd->bhqk", qh, kh) / math.sqrt(hd)
        p = jax.nn.softmax(att, axis=-1)
        ctx = jnp.einsum("bhqk,bhkd->bhqd", p, vh)
        ctx = ctx.transpose(0, 2, 1, 3).reshape(B, S, H)
        x = x + ctx @ params["wo"][l] + params["bo"][l]
        h2 = _layernorm(x, params["ln2_g"][l], params["ln2_b"][l])
        m = jax.nn.gelu(h2 @ params["w1"][l] + params["b1"][l])
        x = x + m @ params["w2"][l] + params["b2"][l]
    h = _layernorm(x, params["ln_f_g"], params["ln_f_b"])
    return h @ params["w_out"] + params["b_out"]


# ----------------------------------------------------------------------------- deterministic parameter init
def init_params(key, cfg):
    H, M, D = cfg["hidden"], cfg["mlp"], cfg["out_dim"]
    C, P, S, L = cfg["channels"], cfg["patch"], cfg["seq"], cfg["layers"]
    std = 0.02

    def nrm(k, shape):
        return (std * jax.random.normal(k, shape)).astype(jnp.float32)

    ks = iter(jax.random.split(key, 8))
    return {
        "patch_w": nrm(next(ks), (C * P * P, H)),
        "patch_b": jnp.zeros((1, H), jnp.float32),
        "cls":     nrm(next(ks), (1, 1, H)),
        "pos":     nrm(next(ks), (1, S, H)),
        # per-layer weights stacked with a leading L axis (streamed per grid step)
        "ln1_g": jnp.ones((L, 1, H), jnp.float32),
        "ln1_b": jnp.zeros((L, 1, H), jnp.float32),
        "wqkv":  nrm(next(ks), (L, H, 3 * H)),
        "bqkv":  jnp.zeros((L, 1, 3 * H), jnp.float32),
        "wo":    nrm(next(ks), (L, H, H)),
        "bo":    jnp.zeros((L, 1, H), jnp.float32),
        "ln2_g": jnp.ones((L, 1, H), jnp.float32),
        "ln2_b": jnp.zeros((L, 1, H), jnp.float32),
        "w1":    nrm(next(ks), (L, H, M)),
        "b1":    jnp.zeros((L, 1, M), jnp.float32),
        "w2":    nrm(next(ks), (L, M, H)),
        "b2":    jnp.zeros((L, 1, H), jnp.float32),
        # final LN + projection head
        "ln_f_g": jnp.ones((1, H), jnp.float32),
        "ln_f_b": jnp.zeros((1, H), jnp.float32),
        "w_out":  nrm(next(ks), (H, D)),
        "b_out":  jnp.zeros((1, D), jnp.float32),
    }


# ----------------------------------------------------------------------------- main
if __name__ == "__main__":
    # small ViT config consistent with the module's forward:
    #   pixel_values (B, 3, 16, 16), patch 4 -> 16 patches + CLS = 17 tokens
    cfg = dict(channels=3, image=16, patch=4, hidden=32, heads=4,
               mlp=128, layers=2, out_dim=16)
    cfg["seq"] = (cfg["image"] // cfg["patch"]) ** 2 + 1

    key = jax.random.PRNGKey(0)
    k_img, k_par = jax.random.split(key)
    pixel_values = jax.random.normal(
        k_img, (2, cfg["channels"], cfg["image"], cfg["image"]), dtype=jnp.float32)
    params = init_params(k_par, cfg)

    feats = vit_extractor_forward(pixel_values, params, cfg)
    feats = jax.block_until_ready(feats)

    ref = vit_extractor_reference(pixel_values, params, cfg)
    assert feats.shape == (2, cfg["seq"], cfg["out_dim"]), feats.shape
    assert jnp.all(jnp.isfinite(feats))
    assert jnp.allclose(feats, ref, atol=2e-3, rtol=2e-3), \
        float(jnp.max(jnp.abs(feats - ref)))

    print("KERNEL_OK")
</pallas_src>

<mosaic_0001>
module attributes {stable_mosaic.version = 11 : i64} {
  func.func @patch_embed_kernel(%arg0: i32, %arg1: memref<32x48xf32, #tpu.memory_space<vmem>>, %arg2: memref<48x32xf32, #tpu.memory_space<vmem>>, %arg3: memref<1x32xf32, #tpu.memory_space<vmem>>, %arg4: memref<32x32xf32, #tpu.memory_space<vmem>>) attributes {dimension_semantics = [#tpu.dimension_semantics<arbitrary>], iteration_bounds = array<i64: 1>, scalar_prefetch = 0 : i64, scratch_operands = 0 : i64, tpu.core_type = #tpu.core_type<tc>, window_params = [{pipeline_mode = #tpu.pipeline_mode<synchronous>, transform_indices = @transform_0, window_bounds = array<i64: 32, 48>}, {pipeline_mode = #tpu.pipeline_mode<synchronous>, transform_indices = @transform_1, window_bounds = array<i64: 48, 32>}, {pipeline_mode = #tpu.pipeline_mode<synchronous>, transform_indices = @transform_2, window_bounds = array<i64: 1, 32>}, {pipeline_mode = #tpu.pipeline_mode<synchronous>, transform_indices = @transform_3, window_bounds = array<i64: 32, 32>}]} {
    %c0 = arith.constant 0 : index
    %c0_0 = arith.constant 0 : index
    %0 = vector.load %arg1[%c0, %c0_0] : memref<32x48xf32, #tpu.memory_space<vmem>>, vector<32x48xf32>
    %c0_1 = arith.constant 0 : index
    %c0_2 = arith.constant 0 : index
    %1 = vector.load %arg2[%c0_1, %c0_2] : memref<48x32xf32, #tpu.memory_space<vmem>>, vector<48x32xf32>
    %cst = arith.constant dense<0.000000e+00> : vector<32x32xf32>
    %2 = tpu.matmul %0, %1, %cst {dimension_numbers = #tpu.dot_dimension_numbers<[1], [0], [0], [1], [0, 0, 1, 1], [], []>} : vector<32x48xf32>, vector<48x32xf32>, vector<32x32xf32> -> vector<32x32xf32>
    %c0_3 = arith.constant 0 : index
    %c0_4 = arith.constant 0 : index
    %3 = vector.load %arg3[%c0_3, %c0_4] : memref<1x32xf32, #tpu.memory_space<vmem>>, vector<1x32xf32>
    %4 = vector.broadcast %3 : vector<1x32xf32> to vector<32x32xf32>
    %5 = arith.addf %2, %4 : vector<32x32xf32>
    %c0_5 = arith.constant 0 : index
    %c0_6 = arith.constant 0 : index
    %6 = vector.load %arg4[%c0_5, %c0_6] : memref<32x32xf32, #tpu.memory_space<vmem>>, vector<32x32xf32>
    tpu.vector_store %arg4[%c0_5, %c0_6], %5 {strides = array<i32>} : memref<32x32xf32, #tpu.memory_space<vmem>>, vector<32x32xf32>,
    return
  }
  func.func @transform_0(%arg0: i32) -> (i32, i32) {
    %c0_i32 = arith.constant 0 : i32
    %c0_i32_0 = arith.constant 0 : i32
    %c0_i32_1 = arith.constant 0 : i32
    return %c0_i32, %c0_i32_0 : i32, i32
  }
  func.func @transform_1(%arg0: i32) -> (i32, i32) {
    %c0_i32 = arith.constant 0 : i32
    %c0_i32_0 = arith.constant 0 : i32
    %c0_i32_1 = arith.constant 0 : i32
    return %c0_i32, %c0_i32_0 : i32, i32
  }
  func.func @transform_2(%arg0: i32) -> (i32, i32) {
    %c0_i32 = arith.constant 0 : i32
    %c0_i32_0 = arith.constant 0 : i32
    %c0_i32_1 = arith.constant 0 : i32
    return %c0_i32, %c0_i32_0 : i32, i32
  }
  func.func @transform_3(%arg0: i32) -> (i32, i32) {
    %c0_i32 = arith.constant 0 : i32
    %c0_i32_0 = arith.constant 0 : i32
    %c0_i32_1 = arith.constant 0 : i32
    return %c0_i32, %c0_i32_0 : i32, i32
  }
}

</mosaic_0001>

<llo_original>
// kernel: tpu_custom_call.1
$region0: #{tpu_custom_call.1}
  #allocation0 [shape = 'u32[]', space=smem, size = 0x4, offset = 0x4, fixed_abs, tag = 'smem constant byte address 0x4 - core index']
  #allocation1 [shape = 'u32[144,128]{1,0:T(1,128)}', space=vmem, size = 0x12000, scoped, tag = 'internal scratch']
  %s0 = inlined_call_operand.vmem [shape: f32[32,48], index: 0, kind: input, shape index: {}]
  %s1 = inlined_call_operand.vmem [shape: f32[48,32], index: 1, kind: input, shape index: {}]
  %s2 = inlined_call_operand.vmem [shape: f32[1,32], index: 2, kind: input, shape index: {}]
  %s3 = inlined_call_operand.hbm [shape: f32[32,32], index: 3, kind: output, shape index: {}]
  %s4 = sld [smem:[#allocation0]]
  $region22: #{tpu_custom_call.1} parent=0
    _
  %s6 = ssub.s32 1, %s4
  %s7 = scalar_select 0, %s6, %s4
  $region1: #{tpu_custom_call.1} parent=0
    #allocation2 [shape = 'u8[16384]{0}', space=vmem, size = 0x4000, scoped, tag = 'output window, operand 0, single buffered']
    #allocation3 [shape = 's32[1]{0}', space=sflag, size = 0x4, scoped, tag = 'scoped memory for tpu_custom_call.1']
    %8 = vsyncpa [#allocation3], 0
    // Predicated region
    $region2: #{tpu_custom_call.1} parent=1 // pred_check
      _
    $region3: #{tpu_custom_call.1} parent=1 // pred_check_branch
      %10 = sbr.rel (0) target = $region5
    $region4: #{tpu_custom_call.1} parent=1 // pred_region
      _
    $region5: #{tpu_custom_call.1} parent=1 // pred_fallthru
      _
    // Predicated region
    $region6: #{tpu_custom_call.1} parent=1 // pred_check
      _
    $region7: #{tpu_custom_call.1} parent=1 // pred_check_branch
      %12 = sbr.rel (0) target = $region9
    $region8: #{tpu_custom_call.1} parent=1 // pred_region
      _
    $region9: #{tpu_custom_call.1} parent=1 // pred_fallthru
      _
    // Predicated region
    $region10: #{tpu_custom_call.1} parent=1 // pred_check
      _
    $region11: #{tpu_custom_call.1} parent=1 // pred_check_branch
      %14 = sbr.rel (0) target = $region13
    $region12: #{tpu_custom_call.1} parent=1 // pred_region
      _
    $region13: #{tpu_custom_call.1} parent=1 // pred_fallthru
      _
    %v15 = vld [vmem:[%s0] sm:$0xff]
    %v16 = vld [vmem:[%s0 + $0x8] sm:$0xff]
    %v17 = vld [vmem:[%s0 + $0x10] sm:$0xff]
    %v18 = vld [vmem:[%s0 + $0x18] sm:$0xff]
    %v19 = vld [vmem:[%s1] sm:$0xff]
    %v20 = vld [vmem:[%s1 + $0x8] sm:$0xff]
    %v21 = vld [vmem:[%s1 + $0x10] sm:$0xff]
    %v22 = vld [vmem:[%s1 + $0x18] sm:$0xff]
    %v23 = vld [vmem:[%s1 + $0x20] sm:$0xff]
    %v24 = vld [vmem:[%s1 + $0x28] sm:$0xff]
    %v25 = vld [vmem:[%s2] sm:$0x1]
    %v27 = vlaneseq
    %v28 = vshrl.u32 %v27, 7
    %v29 = vsub.s32 0, %v28
    %v30 = vrot.slane %v25, %v29
    %vm32 = vcmask 392192
    %v34 = vsel %vm32, %v15, 0
    %v37 = vsel %vm32, %v16, 0
    %v40 = vsel %vm32, %v17, 0
    %v43 = vsel %vm32, %v18, 0
    %45 = vmatprep.subr.mxu0 0.0
    %46 = vmatpush1.msra.mxu0 %v19
    %47 = vmatprep.subr.mxu0 0.0
    %48 = vmatpush1.msra.mxu0 %v20
    %49 = vmatprep.subr.mxu0 0.0
    %50 = vmatpush1.msra.mxu0 %v21
    %51 = vmatprep.subr.mxu0 0.0
    %52 = vmatpush1.msra.mxu0 %v22
    %53 = vmatprep.subr.mxu0 0.0
    %54 = vmatpush1.msra.mxu0 %v23
    %55 = vmatprep.subr.mxu0 0.0
    %56 = vmatpush1.msra.mxu0 %v24
    %57 = vmatprep.subr.mxu0 0.0
    %58 = vmatpush1.msra.mxu0 0.0
    %59 = vmatprep.subr.mxu0 0.0
    %60 = vmatpush1.msra.mxu0 0.0
    %61 = vmatprep.subr.mxu0 0.0
    %62 = vmatpush1.msra.mxu0 0.0
    %63 = vmatprep.subr.mxu0 0.0
    %64 = vmatpush1.msra.mxu0 0.0
    %65 = vmatprep.subr.mxu0 0.0
    %66 = vmatpush1.msra.mxu0 0.0
    %67 = vmatprep.subr.mxu0 0.0
    %68 = vmatpush1.msra.mxu0 0.0
    %69 = vmatprep.subr.mxu0 0.0
    %70 = vmatpush1.msra.mxu0 0.0
    %71 = vmatprep.subr.mxu0 0.0
    %72 = vmatpush1.msra.mxu0 0.0
    %73 = vmatprep.subr.mxu0 0.0
    %74 = vmatpush1.msra.mxu0 0.0
    %75 = vmatprep.subr.mxu0 0.0
    %76 = vmatpush1.msra.mxu0 0.0
    %77 = vmatprep.subr.mxu0 0.0
    %78 = vmatpush1.msra.mxu0 0.0
    %79 = vmatprep.subr.mxu0 0.0
    %80 = vmatpush1.msra.mxu0 0.0
    %81 = vmatprep.subr.mxu0 0.0
    %82 = vmatpush1.msra.mxu0 0.0
    %83 = vmatprep.subr.mxu0 0.0
    %84 = vmatpush1.msra.mxu0 0.0
    %85 = vmatprep.subr.mxu0 0.0
    %86 = vmatpush1.msra.mxu0 0.0
    %87 = vmatprep.subr.mxu0 0.0
    %88 = vmatpush1.msra.mxu0 0.0
    %89 = vmatprep.subr.mxu0 0.0
    %90 = vmatpush1.msra.mxu0 0.0
    %91 = vmatprep.subr.mxu0 0.0
    %92 = vmatpush1.msra.mxu0 0.0
    %93 = vmatprep.subr.mxu0 0.0
    %94 = vmatpush1.msra.mxu0 0.0
    %95 = vmatprep.subr.mxu0 0.0
    %96 = vmatpush1.msra.mxu0 0.0
    %97 = vmatprep.subr.mxu0 0.0
    %98 = vmatpush1.msra.mxu0 0.0
    %99 = vmatprep.subr.mxu0 0.0
    %100 = vmatpush1.msra.mxu0 0.0
    %101 = vmatprep.subr.mxu0 0.0
    %102 = vmatpush1.msra.mxu0 0.0
    %103 = vmatprep.subr.mxu0 0.0
    %104 = vmatpush1.msra.mxu0 0.0
    %105 = vmatprep.subr.mxu0 0.0
    %106 = vmatpush1.msra.mxu0 0.0
    %107 = vmatprep.subr.mxu0 0.0
    %108 = vmatpush1.msra.mxu0 0.0
    %109 = vmatprep.mubr.f32.mxu0 0.0
    %110 = vmatmul.mubr.f32.gmra.mrb[0].mxu0 %v34
    %v111 = vpop.f32.mrb[0].mxu0
    %v112 = vadd.f32 %v30, %v111
    %v113 = vpop.f32.mrb[0].mxu0
    %114 = vmatprep.mubr.f32.mxu0 0.0
    %115 = vmatmul.mubr.f32.gmra.mrb[0].mxu0 %v37
    %v116 = vpop.f32.mrb[0].mxu0
    %v117 = vadd.f32 %v30, %v116
    %v118 = vpop.f32.mrb[0].mxu0
    %119 = vmatprep.mubr.f32.mxu0 0.0
    %120 = vmatmul.mubr.f32.gmra.mrb[0].mxu0 %v40
    %v121 = vpop.f32.mrb[0].mxu0
    %v122 = vadd.f32 %v30, %v121
    %v123 = vpop.f32.mrb[0].mxu0
    %124 = vmatprep.mubr.f32.mxu0 0.0
    %125 = vmatmul.mubr.f32.gmra.mrb[0].mxu0 %v43
    %v126 = vpop.f32.mrb[0].mxu0
    %v127 = vadd.f32 %v30, %v126
    %v128 = vpop.f32.mrb[0].mxu0
    %129 = vdwg.mxu0
    %vm130 = vcmask 261120
    %131 = vst.msk [vmem:[#allocation2] sm:$0xff] %vm130, %v112
    %132 = vst.msk [vmem:[#allocation2 + $0x8] sm:$0xff] %vm130, %v117
    %133 = vst.msk [vmem:[#allocation2 + $0x10] sm:$0xff] %vm130, %v122
    %134 = vst.msk [vmem:[#allocation2 + $0x18] sm:$0xff] %vm130, %v127
    // Predicated region
    $region14: #{tpu_custom_call.1} parent=1 // pred_check
      _
    $region15: #{tpu_custom_call.1} parent=1 // pred_check_branch
      %136 = sbr.rel (0) target = $region17
    $region16: #{tpu_custom_call.1} parent=1 // pred_region
      %s138 = ssub.s32 512, 512
      %139 = vsyncadd [#allocation3], %s138
      %s140 = sshll.u32 [#allocation2], 4
      %s141 = int_to_ptr.vmem [resolvable:$true] %s140
      %146 = dma.vmem_to_hbm [thread:$0]  %s141, 512, %s3, [#allocation3], 128, 128, 8
    $region17: #{tpu_custom_call.1} parent=1 // pred_fallthru
      _
    // Predicated region
    $region18: #{tpu_custom_call.1} parent=1 // pred_check
      _
    $region19: #{tpu_custom_call.1} parent=1 // pred_check_branch
      %148 = sbr.rel (0) target = $region21
    $region20: #{tpu_custom_call.1} parent=1 // pred_region
      %149 = dma.done [#allocation3], 512
    $region21: #{tpu_custom_call.1} parent=1 // pred_fallthru
      _
    %150 = vsyncpa [#allocation3], 1

</llo_original>
